<compile_context>
chip_gen: v5e
topology: v5e:2x2
jax: 0.10.0
libtpu: 0.0.40
codegen_flags: <defaults>
</compile_context>

<pallas_src>
import functools
import math

import jax
import jax.numpy as jnp
import numpy as np
from jax.experimental import pallas as pl
from jax.experimental.pallas import tpu as pltpu

EPS = 1e-5
MASK_VALUE = -1e6  # needle masked_softmax uses -1000000.0

_PARALLEL = pltpu.CompilerParams(dimension_semantics=("parallel",))


def _round_up(x, m):
    return (x + m - 1) // m * m


def _pad_rows(x, mp):
    m = x.shape[0]
    return x if m == mp else jnp.pad(x, ((0, mp - m), (0, 0)))


# ---------------------------------------------------------------------------
# Kernels
# ---------------------------------------------------------------------------
def _linear_kernel(x_ref, w_ref, b_ref, o_ref):
    y = jnp.dot(x_ref[...], w_ref[...], preferred_element_type=jnp.float32)
    o_ref[...] = (y + b_ref[...]).astype(o_ref.dtype)


def _attn_core_kernel(q_ref, k_ref, v_ref, valid_ref, o_ref, *, scale):
    # q_ref: (H, Tq, Dh)   k_ref/v_ref: (H, Tk, Dh)   valid_ref: (Tq, 1) int32
    s = jnp.einsum("hqd,hkd->hqk", q_ref[...], k_ref[...],
                   preferred_element_type=jnp.float32) * scale
    col = jax.lax.broadcasted_iota(jnp.int32, s.shape, dimension=2)
    mask = col < valid_ref[...][None, :, :]            # (H, Tq, Tk)
    s = jnp.where(mask, s, MASK_VALUE)                 # == s*mask + (1-mask)*(-1e6)
    s = s - jnp.max(s, axis=-1, keepdims=True)         # needle Softmax subtracts max
    p = jnp.exp(s)
    p = p / jnp.sum(p, axis=-1, keepdims=True)
    o_ref[...] = jnp.einsum("hqk,hkd->hqd", p, v_ref[...],
                            preferred_element_type=jnp.float32).astype(o_ref.dtype)


def _proj_addnorm_kernel(x_ref, res_ref, w_ref, b_ref, o_ref, *, eps):
    # LayerNorm(dropout(x @ Wo + bo) + residual); dropout(p=0) is identity.
    y = jnp.dot(x_ref[...], w_ref[...], preferred_element_type=jnp.float32)
    z = y + b_ref[...] + res_ref[...]
    d = z.shape[-1]
    mean = jnp.sum(z, axis=-1, keepdims=True) / d
    zc = z - mean
    var = jnp.sum(zc * zc, axis=-1, keepdims=True) / d
    o_ref[...] = (zc * jax.lax.rsqrt(var + eps)).astype(o_ref.dtype)


def _ffn_addnorm_kernel(z_ref, w1_ref, b1_ref, w2_ref, b2_ref, o_ref, *, eps):
    z = z_ref[...]
    h = jnp.maximum(
        jnp.dot(z, w1_ref[...], preferred_element_type=jnp.float32) + b1_ref[...], 0.0)
    y = jnp.dot(h, w2_ref[...], preferred_element_type=jnp.float32) + b2_ref[...]
    t = y + z
    d = t.shape[-1]
    mean = jnp.sum(t, axis=-1, keepdims=True) / d
    tc = t - mean
    var = jnp.sum(tc * tc, axis=-1, keepdims=True) / d
    o_ref[...] = (tc * jax.lax.rsqrt(var + eps)).astype(o_ref.dtype)


# ---------------------------------------------------------------------------
# Pallas wrappers
# ---------------------------------------------------------------------------
def linear_pallas(x, w, b, *, tm=512):
    """x:(M,Din) @ w:(Din,Dout) + b:(Dout,) -> (M,Dout), row-tiled over M."""
    m, din = x.shape
    dout = w.shape[1]
    tm = min(tm, _round_up(m, 8))
    mp = _round_up(m, tm)
    out = pl.pallas_call(
        _linear_kernel,
        out_shape=jax.ShapeDtypeStruct((mp, dout), x.dtype),
        grid_spec=pltpu.PrefetchScalarGridSpec(
            num_scalar_prefetch=0,
            grid=(mp // tm,),
            in_specs=[
                pl.BlockSpec((tm, din), lambda i: (i, 0)),
                pl.BlockSpec((din, dout), lambda i: (0, 0)),
                pl.BlockSpec((1, dout), lambda i: (0, 0)),
            ],
            out_specs=pl.BlockSpec((tm, dout), lambda i: (i, 0)),
        ),
        compiler_params=_PARALLEL,
    )(_pad_rows(x, mp), w, b.reshape(1, dout))
    return out[:m]


def proj_addnorm_pallas(x, residual, w, b, *, eps=EPS, tm=512):
    """LayerNorm((x @ w + b) + residual), row-tiled over M."""
    m, din = x.shape
    dout = w.shape[1]
    tm = min(tm, _round_up(m, 8))
    mp = _round_up(m, tm)
    out = pl.pallas_call(
        functools.partial(_proj_addnorm_kernel, eps=eps),
        out_shape=jax.ShapeDtypeStruct((mp, dout), x.dtype),
        grid_spec=pltpu.PrefetchScalarGridSpec(
            num_scalar_prefetch=0,
            grid=(mp // tm,),
            in_specs=[
                pl.BlockSpec((tm, din), lambda i: (i, 0)),
                pl.BlockSpec((tm, dout), lambda i: (i, 0)),
                pl.BlockSpec((din, dout), lambda i: (0, 0)),
                pl.BlockSpec((1, dout), lambda i: (0, 0)),
            ],
            out_specs=pl.BlockSpec((tm, dout), lambda i: (i, 0)),
        ),
        compiler_params=_PARALLEL,
    )(_pad_rows(x, mp), _pad_rows(residual, mp), w, b.reshape(1, dout))
    return out[:m]


def ffn_addnorm_pallas(z, w1, b1, w2, b2, *, eps=EPS, tm=512):
    """LayerNorm(dense2(relu(dense1(z))) + z), row-tiled over M."""
    m, d = z.shape
    f = w1.shape[1]
    tm = min(tm, _round_up(m, 8))
    mp = _round_up(m, tm)
    out = pl.pallas_call(
        functools.partial(_ffn_addnorm_kernel, eps=eps),
        out_shape=jax.ShapeDtypeStruct((mp, d), z.dtype),
        grid_spec=pltpu.PrefetchScalarGridSpec(
            num_scalar_prefetch=0,
            grid=(mp // tm,),
            in_specs=[
                pl.BlockSpec((tm, d), lambda i: (i, 0)),
                pl.BlockSpec((d, f), lambda i: (0, 0)),
                pl.BlockSpec((1, f), lambda i: (0, 0)),
                pl.BlockSpec((f, d), lambda i: (0, 0)),
                pl.BlockSpec((1, d), lambda i: (0, 0)),
            ],
            out_specs=pl.BlockSpec((tm, d), lambda i: (i, 0)),
        ),
        compiler_params=_PARALLEL,
    )(_pad_rows(z, mp), w1, b1.reshape(1, f), w2, b2.reshape(1, d))
    return out[:m]


def attention_core_pallas(q4, k4, v4, valid_bq):
    """q4,k4,v4: (B,H,T,Dh); valid_bq: (B,Tq) valid lengths -> (B,H,Tq,Dh)."""
    b, h, tq, dh = q4.shape
    tk = k4.shape[2]
    scale = 1.0 / math.sqrt(dh)
    valid = valid_bq.astype(jnp.int32).reshape(b, tq, 1)
    return pl.pallas_call(
        functools.partial(_attn_core_kernel, scale=scale),
        out_shape=jax.ShapeDtypeStruct((b, h, tq, dh), q4.dtype),
        grid_spec=pltpu.PrefetchScalarGridSpec(
            num_scalar_prefetch=0,
            grid=(b,),
            in_specs=[
                pl.BlockSpec((None, h, tq, dh), lambda i: (i, 0, 0, 0)),
                pl.BlockSpec((None, h, tk, dh), lambda i: (i, 0, 0, 0)),
                pl.BlockSpec((None, h, tk, dh), lambda i: (i, 0, 0, 0)),
                pl.BlockSpec((None, tq, 1), lambda i: (i, 0, 0)),
            ],
            out_specs=pl.BlockSpec((None, h, tq, dh), lambda i: (i, 0, 0, 0)),
        ),
        compiler_params=_PARALLEL,
    )(q4, k4, v4, valid)


# ---------------------------------------------------------------------------
# Module-level composition (JAX glue)
# ---------------------------------------------------------------------------
def _split_heads(x, num_heads):       # (B,T,D) -> (B,H,T,Dh)   (transpose_qkv)
    b, t, d = x.shape
    return x.reshape(b, t, num_heads, d // num_heads).transpose(0, 2, 1, 3)


def _merge_heads(x):                  # (B,H,T,Dh) -> (B,T,D)    (transpose_output)
    b, h, t, dh = x.shape
    return x.transpose(0, 2, 1, 3).reshape(b, t, h * dh)


def mha_addnorm_pallas(q_in, kv_in, valid_bq, residual, p, num_heads, *, eps=EPS):
    """MultiHeadAttention followed by AddNorm (W_o fused with add+LayerNorm)."""
    b, tq, d = q_in.shape
    tk = kv_in.shape[1]
    q = linear_pallas(q_in.reshape(b * tq, d), p["Wq"], p["bq"]).reshape(b, tq, d)
    w_kv = jnp.concatenate([p["Wk"], p["Wv"]], axis=1)        # fused K|V projection
    b_kv = jnp.concatenate([p["bk"], p["bv"]], axis=0)
    kv = linear_pallas(kv_in.reshape(b * tk, d), w_kv, b_kv).reshape(b, tk, 2 * d)
    k, v = kv[..., :d], kv[..., d:]

    ctx4 = attention_core_pallas(_split_heads(q, num_heads), _split_heads(k, num_heads),
                                 _split_heads(v, num_heads), valid_bq)
    ctx = _merge_heads(ctx4)
    out = proj_addnorm_pallas(ctx.reshape(b * tq, d), residual.reshape(b * tq, d),
                              p["Wo"], p["bo"], eps=eps)
    return out.reshape(b, tq, d)


def transformer_decoder_block_pallas(X, state, params, num_heads, block_index=0,
                                     training=True, eps=EPS):
    enc_outputs, enc_valid_lens, caches = state
    cached = caches[block_index]
    key_values = X if cached is None else jnp.concatenate([cached, X], axis=1)
    new_caches = list(caches)
    new_caches[block_index] = key_values

    b, t, d = X.shape
    tk = key_values.shape[1]
    if training:
        dec_valid = jnp.tile(jnp.arange(1, t + 1, dtype=jnp.int32), (b, 1))  # causal
    else:
        dec_valid = jnp.full((b, t), tk, dtype=jnp.int32)                     # no mask

    # TODO(synk): Dropout with p > 0 is not implemented (needle's init.randb RNG
    # stream is not reproducible here); with p == 0, as in this demo, Dropout is
    # exactly the identity so the forward semantics are preserved.

    Y = mha_addnorm_pallas(X, key_values, dec_valid, X, params["att1"], num_heads, eps=eps)

    te = enc_outputs.shape[1]
    if enc_valid_lens is None:
        enc_valid = jnp.full((b, t), te, dtype=jnp.int32)
    else:
        enc_valid = jnp.broadcast_to(enc_valid_lens.astype(jnp.int32)[:, None], (b, t))
    Z = mha_addnorm_pallas(Y, enc_outputs, enc_valid, Y, params["att2"], num_heads, eps=eps)

    out = ffn_addnorm_pallas(Z.reshape(b * t, d), params["ffn"]["W1"], params["ffn"]["b1"],
                             params["ffn"]["W2"], params["ffn"]["b2"], eps=eps)
    return out.reshape(b, t, d), (enc_outputs, enc_valid_lens, new_caches)


# ---------------------------------------------------------------------------
# Pure-JAX reference (mirrors the needle module math exactly)
# ---------------------------------------------------------------------------
def _ref_ln(z, eps=EPS):
    d = z.shape[-1]
    mean = z.sum(-1, keepdims=True) / d
    var = ((z - mean) ** 2).sum(-1, keepdims=True) / d
    return (z - mean) / jnp.sqrt(var + eps)


def _ref_mha(q_in, k_in, v_in, valid_lens, p, num_heads):
    b, tq, d = q_in.shape
    tk = k_in.shape[1]
    dh = d // num_heads
    q = q_in @ p["Wq"] + p["bq"]
    k = k_in @ p["Wk"] + p["bk"]
    v = v_in @ p["Wv"] + p["bv"]

    def t(x):
        bb, tt, dd = x.shape
        return x.reshape(bb, tt, num_heads, dd // num_heads).transpose(0, 2, 1, 3) \
                .reshape(bb * num_heads, tt, dd // num_heads)

    qh, kh, vh = t(q), t(k), t(v)
    scores = jnp.einsum("bqd,bkd->bqk", qh, kh) / math.sqrt(dh)
    if valid_lens is not None:
        if valid_lens.ndim == 1:
            rows = jnp.repeat(jnp.repeat(valid_lens, num_heads), tq).reshape(b * num_heads, tq)
        else:
            rows = jnp.repeat(valid_lens, num_heads, axis=0)
        mask = (jnp.arange(tk)[None, None, :] < rows[:, :, None]).astype(scores.dtype)
        scores = scores * mask + (1.0 - mask) * MASK_VALUE
    scores = scores - scores.max(axis=-1, keepdims=True)
    attn = jnp.exp(scores)
    attn = attn / attn.sum(axis=-1, keepdims=True)
    out = jnp.einsum("bqk,bkd->bqd", attn, vh)
    out = out.reshape(b, num_heads, tq, dh).transpose(0, 2, 1, 3).reshape(b, tq, d)
    return out @ p["Wo"] + p["bo"]


def ref_decoder_block(X, enc_outputs, enc_valid_lens, params, num_heads, eps=EPS):
    b, t, d = X.shape
    key_values = X                                             # state cache is None
    dec_valid = jnp.tile(jnp.arange(1, t + 1, dtype=jnp.int32), (b, 1))
    X2 = _ref_mha(X, key_values, key_values, dec_valid, params["att1"], num_heads)
    Y = _ref_ln(X2 + X, eps)
    Y2 = _ref_mha(Y, enc_outputs, enc_outputs, enc_valid_lens, params["att2"], num_heads)
    Z = _ref_ln(Y2 + Y, eps)
    f = jnp.maximum(Z @ params["ffn"]["W1"] + params["ffn"]["b1"], 0.0) \
        @ params["ffn"]["W2"] + params["ffn"]["b2"]
    return _ref_ln(f + Z, eps)


# ---------------------------------------------------------------------------
if __name__ == "__main__":
    B, T, D = 2, 8, 32          # batch, seq, num_hiddens (= key/query/value size)
    H = 4                       # num_heads
    F = 64                      # ffn_num_hiddens

    key = jax.random.PRNGKey(0)
    keys = jax.random.split(key, 22)

    def kaiming_w(k, fan_in, fan_out):          # Linear.weight: kaiming_uniform(in, out)
        bound = math.sqrt(2.0) * math.sqrt(3.0 / fan_in)
        return jax.random.uniform(k, (fan_in, fan_out), jnp.float32, -bound, bound)

    def kaiming_b(k, n):                        # Linear.bias: kaiming_uniform(out, 1)
        bound = math.sqrt(2.0) * math.sqrt(3.0 / n)
        return jax.random.uniform(k, (n,), jnp.float32, -bound, bound)

    def mha_params(ks):
        return {"Wq": kaiming_w(ks[0], D, D), "bq": kaiming_b(ks[1], D),
                "Wk": kaiming_w(ks[2], D, D), "bk": kaiming_b(ks[3], D),
                "Wv": kaiming_w(ks[4], D, D), "bv": kaiming_b(ks[5], D),
                "Wo": kaiming_w(ks[6], D, D), "bo": kaiming_b(ks[7], D)}

    params = {
        "att1": mha_params(keys[0:8]),
        "att2": mha_params(keys[8:16]),
        "ffn": {"W1": kaiming_w(keys[16], D, F), "b1": kaiming_b(keys[17], F),
                "W2": kaiming_w(keys[18], F, D), "b2": kaiming_b(keys[19], D)},
    }

    X = jax.random.normal(keys[20], (B, T, D), jnp.float32)
    enc_outputs = jax.random.normal(keys[21], (B, T, D), jnp.float32)
    enc_valid_lens = jnp.array([5, 8], dtype=jnp.int32)

    state = (enc_outputs, enc_valid_lens, [None])   # decoder block i = 0, empty cache
    out, new_state = transformer_decoder_block_pallas(X, state, params, H,
                                                      block_index=0, training=True)
    out = jax.block_until_ready(out)

    ref = ref_decoder_block(X, enc_outputs, enc_valid_lens, params, H)
    assert out.shape == (B, T, D)
    assert new_state[2][0].shape == (B, T, D)       # state[2][i] = key_values
    np.testing.assert_allclose(np.asarray(out), np.asarray(ref), rtol=2e-3, atol=2e-3)

    print("KERNEL_OK")
</pallas_src>

<mosaic_0001>
module attributes {stable_mosaic.version = 11 : i64} {
  func.func @_linear_kernel(%arg0: i32, %arg1: memref<16x32xf32, #tpu.memory_space<vmem>>, %arg2: memref<32x32xf32, #tpu.memory_space<vmem>>, %arg3: memref<1x32xf32, #tpu.memory_space<vmem>>, %arg4: memref<16x32xf32, #tpu.memory_space<vmem>>) attributes {dimension_semantics = [#tpu.dimension_semantics<parallel>], iteration_bounds = array<i64: 1>, scalar_prefetch = 0 : i64, scratch_operands = 0 : i64, tpu.core_type = #tpu.core_type<tc>, window_params = [{transform_indices = @transform_0, window_bounds = array<i64: 16, 32>}, {pipeline_mode = #tpu.pipeline_mode<synchronous>, transform_indices = @transform_1, window_bounds = array<i64: 32, 32>}, {pipeline_mode = #tpu.pipeline_mode<synchronous>, transform_indices = @transform_2, window_bounds = array<i64: 1, 32>}, {transform_indices = @transform_3, window_bounds = array<i64: 16, 32>}]} {
    %c0 = arith.constant 0 : index
    %c0_0 = arith.constant 0 : index
    %0 = vector.load %arg1[%c0, %c0_0] : memref<16x32xf32, #tpu.memory_space<vmem>>, vector<16x32xf32>
    %c0_1 = arith.constant 0 : index
    %c0_2 = arith.constant 0 : index
    %1 = vector.load %arg2[%c0_1, %c0_2] : memref<32x32xf32, #tpu.memory_space<vmem>>, vector<32x32xf32>
    %cst = arith.constant dense<0.000000e+00> : vector<16x32xf32>
    %2 = tpu.matmul %0, %1, %cst {dimension_numbers = #tpu.dot_dimension_numbers<[1], [0], [0], [1], [0, 0, 1, 1], [], []>} : vector<16x32xf32>, vector<32x32xf32>, vector<16x32xf32> -> vector<16x32xf32>
    %c0_3 = arith.constant 0 : index
    %c0_4 = arith.constant 0 : index
    %3 = vector.load %arg3[%c0_3, %c0_4] : memref<1x32xf32, #tpu.memory_space<vmem>>, vector<1x32xf32>
    %4 = vector.broadcast %3 : vector<1x32xf32> to vector<16x32xf32>
    %5 = arith.addf %2, %4 : vector<16x32xf32>
    %c0_5 = arith.constant 0 : index
    %c0_6 = arith.constant 0 : index
    %6 = vector.load %arg4[%c0_5, %c0_6] : memref<16x32xf32, #tpu.memory_space<vmem>>, vector<16x32xf32>
    tpu.vector_store %arg4[%c0_5, %c0_6], %5 {strides = array<i32>} : memref<16x32xf32, #tpu.memory_space<vmem>>, vector<16x32xf32>,
    return
  }
  func.func @transform_0(%arg0: i32) -> (i32, i32) {
    %c0_i32 = arith.constant 0 : i32
    %c0_i32_0 = arith.constant 0 : i32
    return %arg0, %c0_i32 : i32, i32
  }
  func.func @transform_1(%arg0: i32) -> (i32, i32) {
    %c0_i32 = arith.constant 0 : i32
    %c0_i32_0 = arith.constant 0 : i32
    %c0_i32_1 = arith.constant 0 : i32
    return %c0_i32, %c0_i32_0 : i32, i32
  }
  func.func @transform_2(%arg0: i32) -> (i32, i32) {
    %c0_i32 = arith.constant 0 : i32
    %c0_i32_0 = arith.constant 0 : i32
    %c0_i32_1 = arith.constant 0 : i32
    return %c0_i32, %c0_i32_0 : i32, i32
  }
  func.func @transform_3(%arg0: i32) -> (i32, i32) {
    %c0_i32 = arith.constant 0 : i32
    %c0_i32_0 = arith.constant 0 : i32
    return %arg0, %c0_i32 : i32, i32
  }
}

</mosaic_0001>

<llo_original>
// kernel: tpu_custom_call.1
$region0: #{tpu_custom_call.1}
  #allocation0 [shape = 'u32[]', space=smem, size = 0x4, offset = 0x4, fixed_abs, tag = 'smem constant byte address 0x4 - core index']
  #allocation1 [shape = 'u32[72,128]{1,0:T(1,128)}', space=vmem, size = 0x9000, scoped, tag = 'internal scratch']
  %s0 = inlined_call_operand.hbm [shape: f32[16,32], index: 0, kind: input, shape index: {}]
  %s1 = inlined_call_operand.hbm [shape: f32[32,32], index: 1, kind: input, shape index: {}]
  %s2 = inlined_call_operand.vmem [shape: f32[1,32], index: 2, kind: input, shape index: {}]
  %s3 = inlined_call_operand.hbm [shape: f32[16,32], index: 3, kind: output, shape index: {}]
  %s4 = sld [smem:[#allocation0]]
  $region30: #{tpu_custom_call.1} parent=0
    _
  %s6 = ssub.s32 1, %s4
  %s7 = scalar_select 0, %s6, %s4
  $region1: #{tpu_custom_call.1} parent=0
    #allocation2 [shape = 'u8[8192]{0}', space=vmem, size = 0x2000, scoped, tag = 'input window, operand 0, single buffered']
    #allocation3 [shape = 's32[1]{0}', space=sflag, size = 0x4, scoped, tag = 'scoped memory for tpu_custom_call.1']
    #allocation4 [shape = 's32[1]{0}', space=sflag, size = 0x4, scoped, tag = 'scoped memory for tpu_custom_call.1']
    #allocation5 [shape = 'u8[16384]{0}', space=vmem, size = 0x4000, scoped, tag = 'input window, operand 1, single buffered']
    #allocation6 [shape = 's32[1]{0}', space=sflag, size = 0x4, scoped, tag = 'scoped memory for tpu_custom_call.1']
    #allocation7 [shape = 'u8[8192]{0}', space=vmem, size = 0x2000, scoped, tag = 'output window, operand 0, single buffered']
    %8 = vsyncpa [#allocation3], 0
    %9 = vsyncpa [#allocation6], 0
    %10 = vsyncpa [#allocation4], 0
    // Predicated region
    $region2: #{tpu_custom_call.1} parent=1 // pred_check
      _
    $region3: #{tpu_custom_call.1} parent=1 // pred_check_branch
      %12 = sbr.rel (0) target = $region5
    $region4: #{tpu_custom_call.1} parent=1 // pred_region
      %14 = vsyncadd [#allocation3], 0
      %s15 = sshll.u32 %s0, 4
      %s16 = int_to_ptr.hbm [resolvable:$true] %s15
      %s17 = sshll.u32 [#allocation2], 4
      %s18 = int_to_ptr.vmem [resolvable:$true] %s17
      %23 = dma.hbm_to_vmem [thread:$0]  %s16, 256, %s18, [#allocation3], 128, 128, 8
    $region5: #{tpu_custom_call.1} parent=1 // pred_fallthru
      _
    // Predicated region
    $region6: #{tpu_custom_call.1} parent=1 // pred_check
      _
    $region7: #{tpu_custom_call.1} parent=1 // pred_check_branch
      %25 = sbr.rel (0) target = $region9
    $region8: #{tpu_custom_call.1} parent=1 // pred_region
      %27 = vsyncadd [#allocation6], 0
      %s28 = sshll.u32 %s1, 4
      %s29 = int_to_ptr.hbm [resolvable:$true] %s28
      %s30 = sshll.u32 [#allocation5], 4
      %s31 = int_to_ptr.vmem [resolvable:$true] %s30
      %36 = dma.hbm_to_vmem [thread:$0]  %s29, 512, %s31, [#allocation6], 128, 128, 8
    $region9: #{tpu_custom_call.1} parent=1 // pred_fallthru
      _
    // Predicated region
    $region10: #{tpu_custom_call.1} parent=1 // pred_check
      _
    $region11: #{tpu_custom_call.1} parent=1 // pred_check_branch
      %38 = sbr.rel (0) target = $region13
    $region12: #{tpu_custom_call.1} parent=1 // pred_region
      _
    $region13: #{tpu_custom_call.1} parent=1 // pred_fallthru
      _
    // Predicated region
    $region14: #{tpu_custom_call.1} parent=1 // pred_check
      _
    $region15: #{tpu_custom_call.1} parent=1 // pred_check_branch
      %40 = sbr.rel (0) target = $region17
    $region16: #{tpu_custom_call.1} parent=1 // pred_region
      %42 = dma.done [#allocation3], 256
    $region17: #{tpu_custom_call.1} parent=1 // pred_fallthru
      _
    // Predicated region
    $region18: #{tpu_custom_call.1} parent=1 // pred_check
      _
    $region19: #{tpu_custom_call.1} parent=1 // pred_check_branch
      %44 = sbr.rel (0) target = $region21
    $region20: #{tpu_custom_call.1} parent=1 // pred_region
      %46 = dma.done [#allocation6], 512
    $region21: #{tpu_custom_call.1} parent=1 // pred_fallthru
      _
    %v47 = vld [vmem:[#allocation2] sm:$0xff]
    %v48 = vld [vmem:[#allocation2 + $0x8] sm:$0xff]
    %v49 = vld [vmem:[#allocation5] sm:$0xff]
    %v50 = vld [vmem:[#allocation5 + $0x8] sm:$0xff]
    %v51 = vld [vmem:[#allocation5 + $0x10] sm:$0xff]
    %v52 = vld [vmem:[#allocation5 + $0x18] sm:$0xff]
    %v53 = vld [vmem:[%s2] sm:$0x1]
    %v55 = vperm.slane %v53, 0
    %vm57 = vcmask 261120
    %v59 = vsel %vm57, %v47, 0
    %v62 = vsel %vm57, %v48, 0
    %64 = vmatpush.msra.mxu0 0.0
    %65 = vmatpush.msra.mxu0 0.0
    %66 = vmatpush.msra.mxu0 0.0
    %67 = vmatpush.msra.mxu0 0.0
    %68 = vmatpush.msra.mxu0 0.0
    %69 = vmatpush.msra.mxu0 0.0
    %70 = vmatpush.msra.mxu0 0.0
    %71 = vmatpush.msra.mxu0 0.0
    %72 = vmatpush.msra.mxu0 0.0
    %73 = vmatpush.msra.mxu0 0.0
    %74 = vmatpush.msra.mxu0 0.0
    %75 = vmatpush.msra.mxu0 0.0
    %76 = vmatpush.msra.mxu0 %v52
    %77 = vmatpush.msra.mxu0 %v51
    %78 = vmatpush.msra.mxu0 %v50
    %79 = vmatpush.msra.mxu0 %v49
    %80 = vmatmul.f32.gmra.mxu0 %v59
    %v81 = vpop.f32.mrf.mxu0
    %v82 = vadd.f32 %v55, %v81
    %83 = vmatmul.f32.gmra.mxu0 %v62
    %v84 = vpop.f32.mrf.mxu0
    %v85 = vadd.f32 %v55, %v84
    %86 = vdwg.mxu0
    %87 = vst.msk [vmem:[#allocation7] sm:$0xff] %vm57, %v82
    %88 = vst.msk [vmem:[#allocation7 + $0x8] sm:$0xff] %vm57, %v85
    // Predicated region
    $region22: #{tpu_custom_call.1} parent=1 // pred_check
      _
    $region23: #{tpu_custom_call.1} parent=1 // pred_check_branch
      %90 = sbr.rel (0) target = $region25
    $region24: #{tpu_custom_call.1} parent=1 // pred_region
      %92 = vsyncadd [#allocation4], 0
      %s93 = sshll.u32 [#allocation7], 4
      %s94 = int_to_ptr.vmem [resolvable:$true] %s93
      %s95 = sshll.u32 %s3, 4
      %s96 = int_to_ptr.hbm [resolvable:$true] %s95
      %101 = dma.vmem_to_hbm [thread:$0]  %s94, 256, %s96, [#allocation4], 128, 128, 8
    $region25: #{tpu_custom_call.1} parent=1 // pred_fallthru
      _
    // Predicated region
    $region26: #{tpu_custom_call.1} parent=1 // pred_check
      _
    $region27: #{tpu_custom_call.1} parent=1 // pred_check_branch
      %103 = sbr.rel (0) target = $region29
    $region28: #{tpu_custom_call.1} parent=1 // pred_region
      %105 = dma.done [#allocation4], 256
    $region29: #{tpu_custom_call.1} parent=1 // pred_fallthru
      _
    %106 = vsyncpa [#allocation3], 1
    %107 = vsyncpa [#allocation6], 1
    %108 = vsyncpa [#allocation4], 1

</llo_original>
